<compile_context>
chip_gen: v5e
topology: v5e:2x2
jax: 0.10.0
libtpu: 0.0.40
codegen_flags: <defaults>
</compile_context>

<pallas_src>
import functools

import jax
import jax.numpy as jnp
from jax.experimental import pallas as pl
from jax.experimental.pallas import tpu as pltpu


# ----------------------------------------------------------------------------
# Kernel
# ----------------------------------------------------------------------------
def _gga_kernel(x_ref, wab_ref, bab_ref, wc_ref, bc_ref, out_ref, *, D, vpu_head):
    x = x_ref[...]
    # In-kernel cast to the MXU operand dtype (bf16 by default): free on the
    # VALU slot, avoids a wrapper-side cast that would re-read/write x in HBM.
    if x.dtype != wab_ref.dtype:
        x = x.astype(wab_ref.dtype)

    # Single fused (tile_n, L) @ (L, 2D) matmul, f32 accumulation on the MXU.
    z = jnp.dot(x, wab_ref[...], preferred_element_type=jnp.float32) + bab_ref[...]

    a = jnp.tanh(z[:, :D])                          # attention_a (EUP, f32)
    # sigmoid(z) = 0.5*(tanh(z/2)+1): one EUP push instead of exp + reciprocal.
    b = 0.5 * (jnp.tanh(0.5 * z[:, D:]) + 1.0)      # attention_b (EUP + VALU)
    gated = a * b                                   # sigmoid gating (VPU, f32)

    if vpu_head:
        # num_classes == 1: Wc passed as a lane-dense (1, D) f32 row.  VPU
        # broadcast-multiply + lane reduction replaces an almost-empty MXU pass.
        out = jnp.sum(gated * wc_ref[...], axis=-1, keepdims=True) + bc_ref[...]
    else:
        # Wc is pre-cast to the MXU dtype in prepare_gga_params, so this is a
        # native-bf16 (tile_n, D) @ (D, C) pass with f32 accumulation.
        out = jnp.dot(gated.astype(wc_ref.dtype), wc_ref[...],
                      preferred_element_type=jnp.float32) + bc_ref[...]
    out_ref[...] = out.astype(out_ref.dtype)


# ----------------------------------------------------------------------------
# One-time parameter prep (hoisted out of the per-forward path)
# ----------------------------------------------------------------------------
def prepare_gga_params(wa, ba, wb, bb, wc, bc, *, mxu_dtype=jnp.bfloat16):
    """Fuse Wa||Wb into one (L, 2D) MXU operand, pack biases, reshape/cast Wc.

    wa, wb: (L, D); ba, bb: (1, D) or (D,); wc: (D, C); bc: (1, C) or (C,).
    `mxu_dtype=None` keeps an all-f32 (multi-pass MXU) path.
    Returns (wab, bab, wc_arg, bc) ready for global_gated_attention().
    """
    L, D = wa.shape
    C = wc.shape[1]
    wab = jnp.concatenate([wa, wb], axis=1)                               # (L, 2D)
    bab = jnp.concatenate([ba.reshape(1, D), bb.reshape(1, D)], axis=1)   # (1, 2D)
    bab = bab.astype(jnp.float32)
    bc = bc.reshape(1, C).astype(jnp.float32)
    if mxu_dtype is not None:
        wab = wab.astype(mxu_dtype)
    if C == 1:
        # VPU head stays f32 (v5e has no bf16 VPU); lane-dense (1, D) row.
        wc_arg = wc.reshape(1, D).astype(jnp.float32)
    else:
        wc_arg = wc.astype(mxu_dtype) if mxu_dtype is not None else wc
    return wab, bab, wc_arg, bc


# ----------------------------------------------------------------------------
# Tiling helpers
# ----------------------------------------------------------------------------
def _round_up(v, m):
    return -(-v // m) * m


def _vmem_bytes(tile_n, L, D, C, x_itemsize, w_itemsize):
    """Conservative per-step VMEM estimate used to gate tile_n (v7x: 64 MiB)."""
    x_buf = 2 * tile_n * L * x_itemsize                 # double-buffered x tile
    w_buf = L * 2 * D * w_itemsize + 2 * D * 4          # single-buffered Wa||Wb + bias
    w_buf += D * max(C, 1) * w_itemsize + C * 4         # Wc + bc (approx)
    o_buf = 2 * tile_n * C * 4                          # double-buffered out tile
    tmp = 3 * tile_n * 2 * D * 4                        # z / activations / gating (f32)
    return x_buf + w_buf + o_buf + tmp


def _build_call(N, L, D, C, twoD, wc_shape, out_dtype, tn, vpu_head,
                single_buffer_weights):
    if single_buffer_weights:
        def resident(shape):
            return pl.BlockSpec(shape, lambda i: (0, 0), pipeline_mode=pl.Buffered(1))
    else:
        def resident(shape):
            return pl.BlockSpec(shape, lambda i: (0, 0))

    kernel = functools.partial(_gga_kernel, D=D, vpu_head=vpu_head)
    return pl.pallas_call(
        kernel,
        out_shape=jax.ShapeDtypeStruct((N, C), out_dtype),
        grid_spec=pltpu.PrefetchScalarGridSpec(
            num_scalar_prefetch=0,
            grid=(pl.cdiv(N, tn),),                      # ragged last block OK
            in_specs=[
                pl.BlockSpec((tn, L), lambda i: (i, 0)),  # x row tile
                resident((L, twoD)),                      # Wa||Wb (VMEM resident)
                resident((1, twoD)),                      # ba||bb
                resident(wc_shape),                       # Wc
                resident((1, C)),                         # bc
            ],
            out_specs=pl.BlockSpec((tn, C), lambda i: (i, 0)),
        ),
        compiler_params=pltpu.CompilerParams(
            dimension_semantics=("parallel",),            # megacore row sharding
            vmem_limit_bytes=32 * 1024 * 1024,
        ),
    )


# ----------------------------------------------------------------------------
# Forward wrapper
# ----------------------------------------------------------------------------
def global_gated_attention(x, params, *, tile_n=512,
                           vmem_budget_bytes=24 * 1024 * 1024):
    """Fused gated-attention forward.

    x      : (N, L) input features.
    params : (wab, bab, wc_arg, bc) from prepare_gga_params().
    """
    wab, bab, wc_arg, bc = params
    N, L = x.shape
    twoD = wab.shape[1]
    D = twoD // 2
    C = bc.shape[-1]
    vpu_head = (C == 1)

    # Row tiling: ragged last block (no pad/slice); >= 2 grid steps when N > 8
    # so both v7x TensorCores get work; rows a multiple of 8 (sublane) unless
    # the whole array is a single tiny block; gate against a VMEM budget that
    # is safe on v7x's 64 MiB physical VMEM.
    if N <= 8:
        tn = N
    else:
        tn = min(tile_n, _round_up(-(-N // 2), 8))
        tn = max(8, (tn // 8) * 8)
        while tn > 8 and _vmem_bytes(tn, L, D, C, x.dtype.itemsize,
                                     wab.dtype.itemsize) > vmem_budget_bytes:
            tn = max(8, ((tn // 2) // 8) * 8)

    try:
        call = _build_call(N, L, D, C, twoD, wc_arg.shape, x.dtype, tn,
                           vpu_head, single_buffer_weights=True)
        return call(x, wab, bab, wc_arg, bc)
    except Exception:
        # Compatibility fallback for jax builds without BlockSpec.pipeline_mode.
        call = _build_call(N, L, D, C, twoD, wc_arg.shape, x.dtype, tn,
                           vpu_head, single_buffer_weights=False)
        return call(x, wab, bab, wc_arg, bc)


# ----------------------------------------------------------------------------
# Reference / init
# ----------------------------------------------------------------------------
def _init_params(key, L, D, C, dtype=jnp.float32):
    """Deterministic init mimicking nn.Linear default (uniform +- 1/sqrt(fan_in))."""
    k = jax.random.split(key, 6)
    lim_a = 1.0 / (L ** 0.5)
    lim_c = 1.0 / (D ** 0.5)
    wa = jax.random.uniform(k[0], (L, D), dtype, -lim_a, lim_a)
    ba = jax.random.uniform(k[1], (1, D), dtype, -lim_a, lim_a)
    wb = jax.random.uniform(k[2], (L, D), dtype, -lim_a, lim_a)
    bb = jax.random.uniform(k[3], (1, D), dtype, -lim_a, lim_a)
    wc = jax.random.uniform(k[4], (D, C), dtype, -lim_c, lim_c)
    bc = jax.random.uniform(k[5], (1, C), dtype, -lim_c, lim_c)
    return wa, ba, wb, bb, wc, bc


def _reference(x, wa, ba, wb, bb, wc, bc):
    a = jnp.tanh(x @ wa + ba)
    b = jax.nn.sigmoid(x @ wb + bb)
    return (a * b) @ wc + bc


if __name__ == "__main__":
    key = jax.random.PRNGKey(0)
    kx, kp, kx2, kp2 = jax.random.split(key, 4)

    # --- Test 1: C==1 VPU head, bf16 MXU default, N=16, L=256, D=128 ---------
    N, L, D, C = 16, 256, 128, 1
    x = jax.random.normal(kx, (N, L), jnp.float32)
    wa, ba, wb, bb, wc, bc = _init_params(kp, L, D, C)
    ref = _reference(x, wa, ba, wb, bb, wc, bc)

    params_bf16 = prepare_gga_params(wa, ba, wb, bb, wc, bc)       # bf16 MXU operands
    out = jax.block_until_ready(global_gated_attention(x, params_bf16))
    assert out.shape == (N, C), out.shape
    assert jnp.allclose(out, ref, atol=5e-2, rtol=5e-2), "bf16 path mismatch"

    # f32 MXU path: exact-tolerance check against the reference.
    params_f32 = prepare_gga_params(wa, ba, wb, bb, wc, bc, mxu_dtype=None)
    out32 = jax.block_until_ready(global_gated_attention(x, params_f32))
    assert jnp.allclose(out32, ref, atol=1e-5, rtol=1e-5), "f32 path mismatch"

    # --- Test 2: ragged row grid (N not a tile multiple) + C>1 MXU head ------
    N2, C2 = 20, 3
    x2 = jax.random.normal(kx2, (N2, L), jnp.float32)
    p2 = _init_params(kp2, L, D, C2)
    out2 = jax.block_until_ready(global_gated_attention(x2, prepare_gga_params(*p2)))
    ref2 = _reference(x2, *p2)
    assert out2.shape == (N2, C2), out2.shape
    assert jnp.allclose(out2, ref2, atol=5e-2, rtol=5e-2), "ragged / C>1 mismatch"

    print("KERNEL_OK")
</pallas_src>

<mosaic_0001>
module attributes {stable_mosaic.version = 11 : i64} {
  func.func @_gga_kernel(%arg0: i32, %arg1: memref<8x256xf32, #tpu.memory_space<vmem>>, %arg2: memref<256x256xbf16, #tpu.memory_space<vmem>>, %arg3: memref<1x256xf32, #tpu.memory_space<vmem>>, %arg4: memref<1x128xf32, #tpu.memory_space<vmem>>, %arg5: memref<1x1xf32, #tpu.memory_space<vmem>>, %arg6: memref<8x1xf32, #tpu.memory_space<vmem>>) attributes {dimension_semantics = [#tpu.dimension_semantics<parallel>], iteration_bounds = array<i64: 2>, scalar_prefetch = 0 : i64, scratch_operands = 0 : i64, tpu.core_type = #tpu.core_type<tc>, window_params = [{transform_indices = @transform_0, window_bounds = array<i64: 8, 256>}, {pipeline_mode = #tpu.pipeline_mode<synchronous>, transform_indices = @transform_1, window_bounds = array<i64: 256, 256>}, {pipeline_mode = #tpu.pipeline_mode<synchronous>, transform_indices = @transform_2, window_bounds = array<i64: 1, 256>}, {pipeline_mode = #tpu.pipeline_mode<synchronous>, transform_indices = @transform_3, window_bounds = array<i64: 1, 128>}, {pipeline_mode = #tpu.pipeline_mode<synchronous>, transform_indices = @transform_4, window_bounds = array<i64: 1, 1>}, {transform_indices = @transform_5, window_bounds = array<i64: 8, 1>}]} {
    %c0 = arith.constant 0 : index
    %c0_0 = arith.constant 0 : index
    %0 = vector.load %arg1[%c0, %c0_0] : memref<8x256xf32, #tpu.memory_space<vmem>>, vector<8x256xf32>
    %1 = arith.truncf %0 : vector<8x256xf32> to vector<8x256xbf16>
    %c0_1 = arith.constant 0 : index
    %c0_2 = arith.constant 0 : index
    %2 = vector.load %arg2[%c0_1, %c0_2] : memref<256x256xbf16, #tpu.memory_space<vmem>>, vector<256x256xbf16>
    %cst = arith.constant dense<0.000000e+00> : vector<8x256xf32>
    %3 = tpu.matmul %1, %2, %cst {dimension_numbers = #tpu.dot_dimension_numbers<[1], [0], [0], [1], [0, 0, 1, 1], [], []>} : vector<8x256xbf16>, vector<256x256xbf16>, vector<8x256xf32> -> vector<8x256xf32>
    %c0_3 = arith.constant 0 : index
    %c0_4 = arith.constant 0 : index
    %4 = vector.load %arg3[%c0_3, %c0_4] : memref<1x256xf32, #tpu.memory_space<vmem>>, vector<1x256xf32>
    %5 = vector.broadcast %4 : vector<1x256xf32> to vector<8x256xf32>
    %6 = arith.addf %3, %5 : vector<8x256xf32>
    %7 = vector.extract_strided_slice %6 {offsets = [0, 0], sizes = [8, 128], strides = [1, 1]} : vector<8x256xf32> to vector<8x128xf32>
    %8 = math.tanh %7 : vector<8x128xf32>
    %9 = vector.extract_strided_slice %6 {offsets = [0, 128], sizes = [8, 128], strides = [1, 1]} : vector<8x256xf32> to vector<8x128xf32>
    %cst_5 = arith.constant 5.000000e-01 : f32
    %10 = vector.broadcast %cst_5 : f32 to vector<8x128xf32>
    %11 = arith.mulf %10, %9 : vector<8x128xf32>
    %12 = math.tanh %11 : vector<8x128xf32>
    %cst_6 = arith.constant 1.000000e+00 : f32
    %13 = vector.broadcast %cst_6 : f32 to vector<8x128xf32>
    %14 = arith.addf %12, %13 : vector<8x128xf32>
    %cst_7 = arith.constant 5.000000e-01 : f32
    %15 = vector.broadcast %cst_7 : f32 to vector<8x128xf32>
    %16 = arith.mulf %15, %14 : vector<8x128xf32>
    %17 = arith.mulf %8, %16 : vector<8x128xf32>
    %c0_8 = arith.constant 0 : index
    %c0_9 = arith.constant 0 : index
    %18 = vector.load %arg4[%c0_8, %c0_9] : memref<1x128xf32, #tpu.memory_space<vmem>>, vector<1x128xf32>
    %19 = vector.broadcast %18 : vector<1x128xf32> to vector<8x128xf32>
    %20 = arith.mulf %17, %19 : vector<8x128xf32>
    %cst_10 = arith.constant dense<0.000000e+00> : vector<8xf32>
    %21 = vector.multi_reduction <add>, %20, %cst_10 [1] : vector<8x128xf32> to vector<8xf32>
    %22 = vector.shape_cast %21 : vector<8xf32> to vector<8x1xf32>
    %c0_11 = arith.constant 0 : index
    %c0_12 = arith.constant 0 : index
    %23 = vector.load %arg5[%c0_11, %c0_12] : memref<1x1xf32, #tpu.memory_space<vmem>>, vector<1x1xf32>
    %24 = vector.broadcast %23 : vector<1x1xf32> to vector<8x1xf32>
    %25 = arith.addf %22, %24 : vector<8x1xf32>
    %c0_13 = arith.constant 0 : index
    %c0_14 = arith.constant 0 : index
    %26 = vector.load %arg6[%c0_13, %c0_14] : memref<8x1xf32, #tpu.memory_space<vmem>>, vector<8x1xf32>
    tpu.vector_store %arg6[%c0_13, %c0_14], %25 {strides = array<i32>} : memref<8x1xf32, #tpu.memory_space<vmem>>, vector<8x1xf32>,
    return
  }
  func.func @transform_0(%arg0: i32) -> (i32, i32) {
    %c0_i32 = arith.constant 0 : i32
    %c0_i32_0 = arith.constant 0 : i32
    return %arg0, %c0_i32 : i32, i32
  }
  func.func @transform_1(%arg0: i32) -> (i32, i32) {
    %c0_i32 = arith.constant 0 : i32
    %c0_i32_0 = arith.constant 0 : i32
    %c0_i32_1 = arith.constant 0 : i32
    return %c0_i32, %c0_i32_0 : i32, i32
  }
  func.func @transform_2(%arg0: i32) -> (i32, i32) {
    %c0_i32 = arith.constant 0 : i32
    %c0_i32_0 = arith.constant 0 : i32
    %c0_i32_1 = arith.constant 0 : i32
    return %c0_i32, %c0_i32_0 : i32, i32
  }
  func.func @transform_3(%arg0: i32) -> (i32, i32) {
    %c0_i32 = arith.constant 0 : i32
    %c0_i32_0 = arith.constant 0 : i32
    %c0_i32_1 = arith.constant 0 : i32
    return %c0_i32, %c0_i32_0 : i32, i32
  }
  func.func @transform_4(%arg0: i32) -> (i32, i32) {
    %c0_i32 = arith.constant 0 : i32
    %c0_i32_0 = arith.constant 0 : i32
    %c0_i32_1 = arith.constant 0 : i32
    return %c0_i32, %c0_i32_0 : i32, i32
  }
  func.func @transform_5(%arg0: i32) -> (i32, i32) {
    %c0_i32 = arith.constant 0 : i32
    %c0_i32_0 = arith.constant 0 : i32
    return %arg0, %c0_i32 : i32, i32
  }
}

module attributes {stable_mosaic.version = 11 : i64} {
  func.func @_gga_kernel(%arg0: i32, %arg1: memref<8x256xf32, #tpu.memory_space<vmem>>, %arg2: memref<256x256xbf16, #tpu.memory_space<vmem>>, %arg3: memref<1x256xf32, #tpu.memory_space<vmem>>, %arg4: memref<1x128xf32, #tpu.memory_space<vmem>>, %arg5: memref<1x1xf32, #tpu.memory_space<vmem>>, %arg6: memref<8x1xf32, #tpu.memory_space<vmem>>) attributes {dimension_semantics = [#tpu.dimension_semantics<parallel>], iteration_bounds = array<i64: 2>, scalar_prefetch = 0 : i64, scratch_operands = 0 : i64, tpu.core_type = #tpu.core_type<tc>, window_params = [{transform_indices = @transform_0, window_bounds = array<i64: 8, 256>}, {pipeline_mode = #tpu.pipeline_mode<synchronous>, transform_indices = @transform_1, window_bounds = array<i64: 256, 256>}, {pipeline_mode = #tpu.pipeline_mode<synchronous>, transform_indices = @transform_2, window_bounds = array<i64: 1, 256>}, {pipeline_mode = #tpu.pipeline_mode<synchronous>, transform_indices = @transform_3, window_bounds = array<i64: 1, 128>}, {pipeline_mode = #tpu.pipeline_mode<synchronous>, transform_indices = @transform_4, window_bounds = array<i64: 1, 1>}, {transform_indices = @transform_5, window_bounds = array<i64: 8, 1>}]} {
    %c0 = arith.constant 0 : index
    %c0_0 = arith.constant 0 : index
    %0 = vector.load %arg1[%c0, %c0_0] : memref<8x256xf32, #tpu.memory_space<vmem>>, vector<8x256xf32>
    %1 = arith.truncf %0 : vector<8x256xf32> to vector<8x256xbf16>
    %c0_1 = arith.constant 0 : index
    %c0_2 = arith.constant 0 : index
    %2 = vector.load %arg2[%c0_1, %c0_2] : memref<256x256xbf16, #tpu.memory_space<vmem>>, vector<256x256xbf16>
    %cst = arith.constant dense<0.000000e+00> : vector<8x256xf32>
    %3 = tpu.matmul %1, %2, %cst {dimension_numbers = #tpu.dot_dimension_numbers<[1], [0], [0], [1], [0, 0, 1, 1], [], []>} : vector<8x256xbf16>, vector<256x256xbf16>, vector<8x256xf32> -> vector<8x256xf32>
    %c0_3 = arith.constant 0 : index
    %c0_4 = arith.constant 0 : index
    %4 = vector.load %arg3[%c0_3, %c0_4] : memref<1x256xf32, #tpu.memory_space<vmem>>, vector<1x256xf32>
    %5 = vector.broadcast %4 : vector<1x256xf32> to vector<8x256xf32>
    %6 = arith.addf %3, %5 : vector<8x256xf32>
    %7 = vector.extract_strided_slice %6 {offsets = [0, 0], sizes = [8, 128], strides = [1, 1]} : vector<8x256xf32> to vector<8x128xf32>
    %8 = math.tanh %7 : vector<8x128xf32>
    %9 = vector.extract_strided_slice %6 {offsets = [0, 128], sizes = [8, 128], strides = [1, 1]} : vector<8x256xf32> to vector<8x128xf32>
    %cst_5 = arith.constant 5.000000e-01 : f32
    %10 = vector.broadcast %cst_5 : f32 to vector<8x128xf32>
    %11 = arith.mulf %10, %9 : vector<8x128xf32>
    %12 = math.tanh %11 : vector<8x128xf32>
    %cst_6 = arith.constant 1.000000e+00 : f32
    %13 = vector.broadcast %cst_6 : f32 to vector<8x128xf32>
    %14 = arith.addf %12, %13 : vector<8x128xf32>
    %cst_7 = arith.constant 5.000000e-01 : f32
    %15 = vector.broadcast %cst_7 : f32 to vector<8x128xf32>
    %16 = arith.mulf %15, %14 : vector<8x128xf32>
    %17 = arith.mulf %8, %16 : vector<8x128xf32>
    %c0_8 = arith.constant 0 : index
    %c0_9 = arith.constant 0 : index
    %18 = vector.load %arg4[%c0_8, %c0_9] : memref<1x128xf32, #tpu.memory_space<vmem>>, vector<1x128xf32>
    %19 = vector.broadcast %18 : vector<1x128xf32> to vector<8x128xf32>
    %20 = arith.mulf %17, %19 : vector<8x128xf32>
    %cst_10 = arith.constant dense<0.000000e+00> : vector<8xf32>
    %21 = vector.multi_reduction <add>, %20, %cst_10 [1] : vector<8x128xf32> to vector<8xf32>
    %22 = vector.shape_cast %21 : vector<8xf32> to vector<8x1xf32>
    %c0_11 = arith.constant 0 : index
    %c0_12 = arith.constant 0 : index
    %23 = vector.load %arg5[%c0_11, %c0_12] : memref<1x1xf32, #tpu.memory_space<vmem>>, vector<1x1xf32>
    %24 = vector.broadcast %23 : vector<1x1xf32> to vector<8x1xf32>
    %25 = arith.addf %22, %24 : vector<8x1xf32>
    %c0_13 = arith.constant 0 : index
    %c0_14 = arith.constant 0 : index
    %26 = vector.load %arg6[%c0_13, %c0_14] : memref<8x1xf32, #tpu.memory_space<vmem>>, vector<8x1xf32>
    tpu.vector_store %arg6[%c0_13, %c0_14], %25 {strides = array<i32>} : memref<8x1xf32, #tpu.memory_space<vmem>>, vector<8x1xf32>,
    return
  }
  func.func @transform_0(%arg0: i32) -> (i32, i32) {
    %c0_i32 = arith.constant 0 : i32
    %c0_i32_0 = arith.constant 0 : i32
    return %arg0, %c0_i32 : i32, i32
  }
  func.func @transform_1(%arg0: i32) -> (i32, i32) {
    %c0_i32 = arith.constant 0 : i32
    %c0_i32_0 = arith.constant 0 : i32
    %c0_i32_1 = arith.constant 0 : i32
    return %c0_i32, %c0_i32_0 : i32, i32
  }
  func.func @transform_2(%arg0: i32) -> (i32, i32) {
    %c0_i32 = arith.constant 0 : i32
    %c0_i32_0 = arith.constant 0 : i32
    %c0_i32_1 = arith.constant 0 : i32
    return %c0_i32, %c0_i32_0 : i32, i32
  }
  func.func @transform_3(%arg0: i32) -> (i32, i32) {
    %c0_i32 = arith.constant 0 : i32
    %c0_i32_0 = arith.constant 0 : i32
    %c0_i32_1 = arith.constant 0 : i32
    return %c0_i32, %c0_i32_0 : i32, i32
  }
  func.func @transform_4(%arg0: i32) -> (i32, i32) {
    %c0_i32 = arith.constant 0 : i32
    %c0_i32_0 = arith.constant 0 : i32
    %c0_i32_1 = arith.constant 0 : i32
    return %c0_i32, %c0_i32_0 : i32, i32
  }
  func.func @transform_5(%arg0: i32) -> (i32, i32) {
    %c0_i32 = arith.constant 0 : i32
    %c0_i32_0 = arith.constant 0 : i32
    return %arg0, %c0_i32 : i32, i32
  }
}

</mosaic_0001>

<llo_original>
// kernel: tpu_custom_call.1
$region0: #{tpu_custom_call.1}
  #allocation0 [shape = 'u32[]', space=smem, size = 0x4, offset = 0x4, fixed_abs, tag = 'smem constant byte address 0x4 - core index']
  #allocation1 [shape = 'u32[72,128]{1,0:T(1,128)}', space=vmem, size = 0x9000, scoped, tag = 'internal scratch']
  #allocation2 [shape = 'f32[1,1]{1,0:T(1,128)S(1)}', space=vmem, size = 0x200, scoped, tag = 'scoped memory for tpu_custom_call.1']
  %s0 = inlined_call_operand.hbm [shape: f32[16,256], index: 0, kind: input, shape index: {}]
  %s1 = inlined_call_operand.hbm [shape: bf16[256,256], index: 1, kind: input, shape index: {}]
  %s2 = inlined_call_operand.vmem [shape: f32[1,256], index: 2, kind: input, shape index: {}]
  %s3 = inlined_call_operand.vmem [shape: f32[1,128], index: 3, kind: input, shape index: {}]
  %s4 = inlined_call_operand.<no memory space> [shape: f32[1,1], index: 4, kind: input, shape index: {}]
  %s5 = inlined_call_operand.vmem [shape: f32[16,1], index: 5, kind: output, shape index: {}]
  %s6 = sld [smem:[#allocation0]]
  $region61: #{tpu_custom_call.1} parent=0
    _
  %s8 = ssub.s32 1, %s6
  %s9 = scalar_select 0, %s8, %s6
  %v10 = vstv %s4
  %11 = vst [vmem:[#allocation2] sm:$0x1] %v10
  $region1: #{tpu_custom_call.1} parent=0
    #allocation3 [shape = 'u8[16384]{0}', space=vmem, size = 0x4000, scoped, tag = 'input window, operand 0']
    #allocation4 [shape = 's32[2]{0}', space=sflag, size = 0x8, scoped, tag = 'scoped memory for tpu_custom_call.1']
    #allocation5 [shape = 'u8[131072]{0}', space=vmem, size = 0x20000, scoped, tag = 'input window, operand 1, single buffered']
    #allocation6 [shape = 's32[1]{0}', space=sflag, size = 0x4, scoped, tag = 'scoped memory for tpu_custom_call.1']
    %12 = vsyncpa [#allocation4], 0
    %s13 = scalar_lea.sflag [#allocation4], 1
    %14 = vsyncpa %s13, 0
    %15 = vsyncpa [#allocation6], 0
    loop: start=0, step=1, limit=4
    $region2: #{tpu_custom_call.1} parent=1 // loop_pre_header
      _
    $region3: #{tpu_custom_call.1} parent=1 // loop_header
      %s17 = sphi 0, %s21
      %p18 = scmp.ge.s32.totalorder %s17, 4
      %s27 = sphi 0, %s29
      %s30 = sphi 0, %s27
      %s31 = sphi 0, %s30
      %s47 = sphi 0, %s31
      %s51 = sphi 0, %s51
      %s53 = sphi 0, %s51
      %s54 = sphi 0, %s53
      %s68 = sphi 0, %s54
      %s72 = sphi 0, %s72
      %s74 = sphi 0, %s72
      %s75 = sphi 0, %s74
      %s89 = sphi 0, %s75
      %s93 = sphi 0, %s93
      %s95 = sphi 0, %s93
      %s96 = sphi 0, %s95
      %s110 = sphi 0, %s96
      %s114 = sphi 0, %s114
      %s116 = sphi 0, %s114
      %s117 = sphi 0, %s116
      %s131 = sphi 0, %s117
      %s137 = sphi 0, %s139
      %s140 = sphi 0, %s137
      %s141 = sphi 0, %s140
      %s157 = sphi 0, %s141
    $region4: #{tpu_custom_call.1} parent=1 // loop_header_branch
      %20 = sbr.rel (%p18) target = $region8
    $region5: #{tpu_custom_call.1} parent=1 // loop_body
      %s22 = ssub.s32 %s17, 1
      %s23 = ssub.s32 %s17, 2
      %s24 = sadd.s32 %s17, 1
      %s25 = ssub.s32 %s17, %s24
      %p26 = scmp.eq.s32.totalorder %s25, 0
      %s28 = sadd.s32 %s27, 1
      %s29 = scalar_select %p26, %s27, %s28
      %p32 = pneg %p26
      %p33 = scmp.eq.s32.totalorder %s17, 1
      %p34 = por %p32, %p33
      %p35 = scmp.ne.s32.totalorder %s27, %s30
      %p36 = scmp.eq.s32.totalorder %s17, 0
      %p37 = por %p35, %p36
      %p38 = scmp.ne.s32.totalorder %s27, %s30
      %p39 = scmp.eq.s32.totalorder %s22, 1
      %p40 = por %p38, %p39
      %p41 = scmp.ne.s32.totalorder %s30, %s31
      %p42 = scmp.eq.s32.totalorder %s22, 0
      %p43 = por %p41, %p42
      %p44 = scmp.ne.s32.totalorder %s30, %s31
      %p45 = scmp.eq.s32.totalorder %s23, 1
      %p46 = por %p44, %p45
      %p48 = scmp.ne.s32.totalorder %s31, %s47
      %p49 = scmp.eq.s32.totalorder %s23, 0
      %p50 = por %p48, %p49
      %s52 = sadd.s32 %s51, 1
      %p55 = scmp.eq.s32.totalorder %s17, 1
      %p56 = scmp.ne.s32.totalorder %s51, %s53
      %p57 = scmp.eq.s32.totalorder %s17, 0
      %p58 = por %p56, %p57
      %p59 = scmp.ne.s32.totalorder %s51, %s53
      %p60 = scmp.eq.s32.totalorder %s22, 1
      %p61 = por %p59, %p60
      %p62 = scmp.ne.s32.totalorder %s53, %s54
      %p63 = scmp.eq.s32.totalorder %s22, 0
      %p64 = por %p62, %p63
      %p65 = scmp.ne.s32.totalorder %s53, %s54
      %p66 = scmp.eq.s32.totalorder %s23, 1
      %p67 = por %p65, %p66
      %p69 = scmp.ne.s32.totalorder %s54, %s68
      %p70 = scmp.eq.s32.totalorder %s23, 0
      %p71 = por %p69, %p70
      %s73 = sadd.s32 %s72, 1
      %p76 = scmp.eq.s32.totalorder %s17, 1
      %p77 = scmp.ne.s32.totalorder %s72, %s74
      %p78 = scmp.eq.s32.totalorder %s17, 0
      %p79 = por %p77, %p78
      %p80 = scmp.ne.s32.totalorder %s72, %s74
      %p81 = scmp.eq.s32.totalorder %s22, 1
      %p82 = por %p80, %p81
      %p83 = scmp.ne.s32.totalorder %s74, %s75
      %p84 = scmp.eq.s32.totalorder %s22, 0
      %p85 = por %p83, %p84
      %p86 = scmp.ne.s32.totalorder %s74, %s75
      %p87 = scmp.eq.s32.totalorder %s23, 1
      %p88 = por %p86, %p87
      %p90 = scmp.ne.s32.totalorder %s75, %s89
      %p91 = scmp.eq.s32.totalorder %s23, 0
      %p92 = por %p90, %p91
      %s94 = sadd.s32 %s93, 1
      %p97 = scmp.eq.s32.totalorder %s17, 1
      %p98 = scmp.ne.s32.totalorder %s93, %s95
      %p99 = scmp.eq.s32.totalorder %s17, 0
      %p100 = por %p98, %p99
      %p101 = scmp.ne.s32.totalorder %s93, %s95
      %p102 = scmp.eq.s32.totalorder %s22, 1
      %p103 = por %p101, %p102
      %p104 = scmp.ne.s32.totalorder %s95, %s96
      %p105 = scmp.eq.s32.totalorder %s22, 0
      %p106 = por %p104, %p105
      %p107 = scmp.ne.s32.totalorder %s95, %s96
      %p108 = scmp.eq.s32.totalorder %s23, 1
      %p109 = por %p107, %p108
      %p111 = scmp.ne.s32.totalorder %s96, %s110
      %p112 = scmp.eq.s32.totalorder %s23, 0
      %p113 = por %p111, %p112
      %s115 = sadd.s32 %s114, 1
      %p118 = scmp.eq.s32.totalorder %s17, 1
      %p119 = scmp.ne.s32.totalorder %s114, %s116
      %p120 = scmp.eq.s32.totalorder %s17, 0
      %p121 = por %p119, %p120
      %p122 = scmp.ne.s32.totalorder %s114, %s116
      %p123 = scmp.eq.s32.totalorder %s22, 1
      %p124 = por %p122, %p123
      %p125 = scmp.ne.s32.totalorder %s116, %s117
      %p126 = scmp.eq.s32.totalorder %s22, 0
      %p127 = por %p125, %p126
      %p128 = scmp.ne.s32.totalorder %s116, %s117
      %p129 = scmp.eq.s32.totalorder %s23, 1
      %p130 = por %p128, %p129
      %p132 = scmp.ne.s32.totalorder %s117, %s131
      %p133 = scmp.eq.s32.totalorder %s23, 0
      %p134 = por %p132, %p133
      %s135 = ssub.s32 %s17, %s24
      %p136 = scmp.eq.s32.totalorder %s135, 0
      %s138 = sadd.s32 %s137, 1
      %s139 = scalar_select %p136, %s137, %s138
      %p142 = pneg %p136
      %p143 = scmp.eq.s32.totalorder %s17, 1
      %p144 = por %p142, %p143
      %p145 = scmp.ne.s32.totalorder %s137, %s140
      %p146 = scmp.eq.s32.totalorder %s17, 0
      %p147 = por %p145, %p146
      %p148 = scmp.ne.s32.totalorder %s137, %s140
      %p149 = scmp.eq.s32.totalorder %s22, 1
      %p150 = por %p148, %p149
      %p151 = scmp.ne.s32.totalorder %s140, %s141
      %p152 = scmp.eq.s32.totalorder %s22, 0
      %p153 = por %p151, %p152
      %p154 = scmp.ne.s32.totalorder %s140, %s141
      %p155 = scmp.eq.s32.totalorder %s23, 1
      %p156 = por %p154, %p155
      %p158 = scmp.ne.s32.totalorder %s141, %s157
      %p159 = scmp.eq.s32.totalorder %s23, 0
      %p160 = por %p158, %p159
      %p161 = scmp.le.s32.totalorder 1, %s17
      %p162 = scmp.lt.s32.totalorder %s17, 3
      %p163 = pnand %p161, %p162
      %p164 = pneg %p163
      // Predicated region
      $region9: #{tpu_custom_call.1} parent=5 // pred_check
        _
      $region10: #{tpu_custom_call.1} parent=5 // pred_check_branch
        %166 = sbr.rel (%p163) target = $region12
      $region11: #{tpu_custom_call.1} parent=5 // pred_region
        %s167 = ssub.s32 %s17, 1
        // Predicated region
        $region13: #{tpu_custom_call.1} parent=11 // pred_check
          %p168 = pneg %p64
        $region14: #{tpu_custom_call.1} parent=11 // pred_check_branch
          %170 = sbr.rel (%p168) target = $region16
        $region15: #{tpu_custom_call.1} parent=11 // pred_region
          %172 = vsyncadd [#allocation6], 0
          %s173 = sshll.u32 %s1, 4
          %s174 = int_to_ptr.hbm [resolvable:$true] %s173
          %s175 = sshll.u32 [#allocation5], 4
          %s176 = int_to_ptr.vmem [resolvable:$true] %s175
          %181 = dma.hbm_to_vmem [thread:$0]  %s174, 4096, %s176, [#allocation6], 128, 128, 8
        $region16: #{tpu_custom_call.1} parent=11 // pred_fallthru
          _
        // Predicated region
        $region17: #{tpu_custom_call.1} parent=11 // pred_check
          %p182 = pneg %p85
        $region18: #{tpu_custom_call.1} parent=11 // pred_check_branch
          %184 = sbr.rel (%p182) target = $region20
        $region19: #{tpu_custom_call.1} parent=11 // pred_region
          _
        $region20: #{tpu_custom_call.1} parent=11 // pred_fallthru
          _
        // Predicated region
        $region21: #{tpu_custom_call.1} parent=11 // pred_check
          %p185 = pneg %p106
        $region22: #{tpu_custom_call.1} parent=11 // pred_check_branch
          %187 = sbr.rel (%p185) target = $region24
        $region23: #{tpu_custom_call.1} parent=11 // pred_region
          _
        $region24: #{tpu_custom_call.1} parent=11 // pred_fallthru
          _
        // Predicated region
        $region25: #{tpu_custom_call.1} parent=11 // pred_check
          %p188 = pneg %p127
        $region26: #{tpu_custom_call.1} parent=11 // pred_check_branch
          %190 = sbr.rel (%p188) target = $region28
        $region27: #{tpu_custom_call.1} parent=11 // pred_region
          _
        $region28: #{tpu_custom_call.1} parent=11 // pred_fallthru
          _
      $region12: #{tpu_custom_call.1} parent=5 // pred_fallthru
        _
      %p191 = scmp.lt.s32.totalorder %s17, 2
      // Predicated region
      $region29: #{tpu_custom_call.1} parent=5 // pred_check
        %p192 = pneg %p191
      $region30: #{tpu_custom_call.1} parent=5 // pred_check_branch
        %194 = sbr.rel (%p192) target = $region32
      $region31: #{tpu_custom_call.1} parent=5 // pred_region
        // Predicated region
        $region33: #{tpu_custom_call.1} parent=31 // pred_check
          %p195 = pneg %p37
        $region34: #{tpu_custom_call.1} parent=31 // pred_check_branch
          %197 = sbr.rel (%p195) target = $region36
        $region35: #{tpu_custom_call.1} parent=31 // pred_region
          %s198 = sand.u32 %s27, 1
          %s199 = scalar_lea.sflag [#allocation4], %s198
          %s200 = sand.u32 %s27, 1
          %s201 = smul.addr %s200, 16
          %s202 = scalar_lea.vmem [#allocation3], %s201
          %204 = vsyncadd %s199, 0
          %s205 = smul.addr %s17, 2
          %s206 = smul.addr %s205, 8
          %s207 = scalar_lea.hbm %s0, %s206
          %s209 = sshll.u32 %s207, 4
          %s210 = int_to_ptr.hbm [resolvable:$true] %s209
          %s211 = sshll.u32 %s202, 4
          %s212 = int_to_ptr.vmem [resolvable:$true] %s211
          %214 = dma.hbm_to_vmem [thread:$0]  %s210, 256, %s212, %s199
        $region36: #{tpu_custom_call.1} parent=31 // pred_fallthru
          _
      $region32: #{tpu_custom_call.1} parent=5 // pred_fallthru
        _
      %p215 = scmp.le.s32.totalorder 1, %s17
      %p216 = scmp.lt.s32.totalorder %s17, 3
      %p217 = pnand %p215, %p216
      %p218 = pneg %p217
      // Predicated region
      $region37: #{tpu_custom_call.1} parent=5 // pred_check
        _
      $region38: #{tpu_custom_call.1} parent=5 // pred_check_branch
        %220 = sbr.rel (%p217) target = $region40
      $region39: #{tpu_custom_call.1} parent=5 // pred_region
        %s221 = ssub.s32 %s17, 1
        %s222 = sand.u32 %s30, 1
        %s223 = scalar_lea.sflag [#allocation4], %s222
        %s224 = sand.u32 %s30, 1
        %s225 = smul.addr %s224, 16
        %s226 = scalar_lea.vmem [#allocation3], %s225
        // Predicated region
        $region41: #{tpu_custom_call.1} parent=39 // pred_check
          %p227 = pneg %p43
        $region42: #{tpu_custom_call.1} parent=39 // pred_check_branch
          %229 = sbr.rel (%p227) target = $region44
        $region43: #{tpu_custom_call.1} parent=39 // pred_region
          %231 = dma.done %s223, 256
        $region44: #{tpu_custom_call.1} parent=39 // pred_fallthru
          _
        // Predicated region
        $region45: #{tpu_custom_call.1} parent=39 // pred_check
          %p232 = pneg %p64
        $region46: #{tpu_custom_call.1} parent=39 // pred_check_branch
          %234 = sbr.rel (%p232) target = $region48
        $region47: #{tpu_custom_call.1} parent=39 // pred_region
          %236 = dma.done [#allocation6], 4096
        $region48: #{tpu_custom_call.1} parent=39 // pred_fallthru
          _
        %s237 = sand.u32 %s30, 1
        %s238 = scalar_lea.sflag [#allocation4], %s237
        %s239 = sand.u32 %s30, 1
        %s240 = smul.addr %s239, 16
        %s241 = scalar_lea.vmem [#allocation3], %s240
        %p242 = pneg %p43
        %p243 = pneg %p40
        %p244 = pneg %p64
        %p245 = pneg %p61
        %p246 = pneg %p85
        %p247 = pneg %p82
        %p248 = pneg %p106
        %p249 = pneg %p103
        %p250 = pneg %p127
        %p251 = pneg %p124
        %p252 = pneg %p153
        %p253 = pneg %p150
        %p254 = scmp.lt.s32.totalorder %s22, 1
        %s255 = scalar_select %p254, %s22, 1
        %s256 = smul.addr %s255, 8
        %s257 = scalar_lea.vmem %s5, %s256
        %p258 = scmp.lt.s32.totalorder %s22, 1
        %s259 = scalar_select %p258, %s22, 1
        %s260 = smul.addr %s259, 8
        %s261 = scalar_lea.vmem %s5, %s260
        %v262 = vld [vmem:[%s226] sm:$0xff]
        %v263 = vld [vmem:[%s226 + $0x8] sm:$0xff]
        %v264 = vpack.c.bf16 %v262, %v262
        %v265 = vpack.c.bf16 %v263, %v263
        %v266 = vld [vmem:[#allocation5] sm:$0xff]
        %v267 = vld [vmem:[#allocation5 + $0x8] sm:$0xff]
        %v268 = vld [vmem:[#allocation5 + $0x10] sm:$0xff]
        %v269 = vld [vmem:[#allocation5 + $0x18] sm:$0xff]
        %v270 = vld [vmem:[#allocation5 + $0x20] sm:$0xff]
        %v271 = vld [vmem:[#allocation5 + $0x28] sm:$0xff]
        %v272 = vld [vmem:[#allocation5 + $0x30] sm:$0xff]
        %v273 = vld [vmem:[#allocation5 + $0x38] sm:$0xff]
        %v274 = vld [vmem:[#allocation5 + $0x40] sm:$0xff]
        %v275 = vld [vmem:[#allocation5 + $0x48] sm:$0xff]
        %v276 = vld [vmem:[#allocation5 + $0x50] sm:$0xff]
        %v277 = vld [vmem:[#allocation5 + $0x58] sm:$0xff]
        %v278 = vld [vmem:[#allocation5 + $0x60] sm:$0xff]
        %v279 = vld [vmem:[#allocation5 + $0x68] sm:$0xff]
        %v280 = vld [vmem:[#allocation5 + $0x70] sm:$0xff]
        %v281 = vld [vmem:[#allocation5 + $0x78] sm:$0xff]
        %v282 = vld [vmem:[#allocation5 + $0x80] sm:$0xff]
        %v283 = vld [vmem:[#allocation5 + $0x88] sm:$0xff]
        %v284 = vld [vmem:[#allocation5 + $0x90] sm:$0xff]
        %v285 = vld [vmem:[#allocation5 + $0x98] sm:$0xff]
        %v286 = vld [vmem:[#allocation5 + $0xa0] sm:$0xff]
        %v287 = vld [vmem:[#allocation5 + $0xa8] sm:$0xff]
        %v288 = vld [vmem:[#allocation5 + $0xb0] sm:$0xff]
        %v289 = vld [vmem:[#allocation5 + $0xb8] sm:$0xff]
        %v290 = vld [vmem:[#allocation5 + $0xc0] sm:$0xff]
        %v291 = vld [vmem:[#allocation5 + $0xc8] sm:$0xff]
        %v292 = vld [vmem:[#allocation5 + $0xd0] sm:$0xff]
        %v293 = vld [vmem:[#allocation5 + $0xd8] sm:$0xff]
        %v294 = vld [vmem:[#allocation5 + $0xe0] sm:$0xff]
        %v295 = vld [vmem:[#allocation5 + $0xe8] sm:$0xff]
        %v296 = vld [vmem:[#allocation5 + $0xf0] sm:$0xff]
        %v297 = vld [vmem:[#allocation5 + $0xf8] sm:$0xff]
        %v298 = vld [vmem:[%s2] sm:$0x3]
        %v300 = vperm.slane %v298, 0
        %v301 = vperm.slane %v298, 1
        %v336 = vunpack.c.l.b16 %v266
        %v337 = vunpack.c.h.b16 %v266
        %v338 = vunpack.c.l.b16 %v267
        %v339 = vunpack.c.h.b16 %v267
        %v340 = vunpack.c.l.b16 %v268
        %v341 = vunpack.c.h.b16 %v268
        %v342 = vunpack.c.l.b16 %v269
        %v343 = vunpack.c.h.b16 %v269
        %v344 = vunpack.c.l.b16 %v270
        %v345 = vunpack.c.h.b16 %v270
        %v346 = vunpack.c.l.b16 %v271
        %v347 = vunpack.c.h.b16 %v271
        %v348 = vunpack.c.l.b16 %v272
        %v349 = vunpack.c.h.b16 %v272
        %v350 = vunpack.c.l.b16 %v273
        %v351 = vunpack.c.h.b16 %v273
        %v352 = vunpack.c.l.b16 %v274
        %v353 = vunpack.c.h.b16 %v274
        %v354 = vunpack.c.l.b16 %v275
        %v355 = vunpack.c.h.b16 %v275
        %v356 = vunpack.c.l.b16 %v276
        %v357 = vunpack.c.h.b16 %v276
        %v358 = vunpack.c.l.b16 %v277
        %v359 = vunpack.c.h.b16 %v277
        %v360 = vunpack.c.l.b16 %v278
        %v361 = vunpack.c.h.b16 %v278
        %v362 = vunpack.c.l.b16 %v279
        %v363 = vunpack.c.h.b16 %v279
        %v364 = vunpack.c.l.b16 %v280
        %v365 = vunpack.c.h.b16 %v280
        %v366 = vunpack.c.l.b16 %v281
        %v367 = vunpack.c.h.b16 %v281
        %v368 = vunpack.c.l.b16 %v282
        %v369 = vunpack.c.h.b16 %v282
        %v370 = vunpack.c.l.b16 %v283
        %v371 = vunpack.c.h.b16 %v283
        %v372 = vunpack.c.l.b16 %v284
        %v373 = vunpack.c.h.b16 %v284
        %v374 = vunpack.c.l.b16 %v285
        %v375 = vunpack.c.h.b16 %v285
        %v376 = vunpack.c.l.b16 %v286
        %v377 = vunpack.c.h.b16 %v286
        %v378 = vunpack.c.l.b16 %v287
        %v379 = vunpack.c.h.b16 %v287
        %v380 = vunpack.c.l.b16 %v288
        %v381 = vunpack.c.h.b16 %v288
        %v382 = vunpack.c.l.b16 %v289
        %v383 = vunpack.c.h.b16 %v289
        %v384 = vunpack.c.l.b16 %v290
        %v385 = vunpack.c.h.b16 %v290
        %v386 = vunpack.c.l.b16 %v291
        %v387 = vunpack.c.h.b16 %v291
        %v388 = vunpack.c.l.b16 %v292
        %v389 = vunpack.c.h.b16 %v292
        %v390 = vunpack.c.l.b16 %v293
        %v391 = vunpack.c.h.b16 %v293
        %v392 = vunpack.c.l.b16 %v294
        %v393 = vunpack.c.h.b16 %v294
        %v394 = vunpack.c.l.b16 %v295
        %v395 = vunpack.c.h.b16 %v295
        %v396 = vunpack.c.l.b16 %v296
        %v397 = vunpack.c.h.b16 %v296
        %v398 = vunpack.c.l.b16 %v297
        %v399 = vunpack.c.h.b16 %v297
        %v400 = vpack.c.b16 %v338, %v336
        %v401 = vpack.c.b16 %v339, %v337
        %v402 = vpack.c.b16 %v342, %v340
        %v403 = vpack.c.b16 %v343, %v341
        %v404 = vpack.c.b16 %v346, %v344
        %v405 = vpack.c.b16 %v347, %v345
        %v406 = vpack.c.b16 %v350, %v348
        %v407 = vpack.c.b16 %v351, %v349
        %v408 = vpack.c.b16 %v354, %v352
        %v409 = vpack.c.b16 %v355, %v353
        %v410 = vpack.c.b16 %v358, %v356
        %v411 = vpack.c.b16 %v359, %v357
        %v412 = vpack.c.b16 %v362, %v360
        %v413 = vpack.c.b16 %v363, %v361
        %v414 = vpack.c.b16 %v366, %v364
        %v415 = vpack.c.b16 %v367, %v365
        %v416 = vpack.c.b16 %v370, %v368
        %v417 = vpack.c.b16 %v371, %v369
        %v418 = vpack.c.b16 %v374, %v372
        %v419 = vpack.c.b16 %v375, %v373
        %v420 = vpack.c.b16 %v378, %v376
        %v421 = vpack.c.b16 %v379, %v377
        %v422 = vpack.c.b16 %v382, %v380
        %v423 = vpack.c.b16 %v383, %v381
        %v424 = vpack.c.b16 %v386, %v384
        %v425 = vpack.c.b16 %v387, %v385
        %v426 = vpack.c.b16 %v390, %v388
        %v427 = vpack.c.b16 %v391, %v389
        %v428 = vpack.c.b16 %v394, %v392
        %v429 = vpack.c.b16 %v395, %v393
        %v430 = vpack.c.b16 %v398, %v396
        %v431 = vpack.c.b16 %v399, %v397
        %464 = vmatpush.bf16.msra.mxu0 %v414
        %465 = vmatpush.bf16.msra.mxu0 %v412
        %466 = vmatpush.bf16.msra.mxu0 %v410
        %467 = vmatpush.bf16.msra.mxu0 %v408
        %468 = vmatpush.bf16.msra.mxu0 %v406
        %469 = vmatpush.bf16.msra.mxu0 %v404
        %470 = vmatpush.bf16.msra.mxu0 %v402
        %471 = vmatpush.bf16.msra.mxu0 %v400
        %472 = vmatmul.bf16.gmra.mxu0 %v264
        %v473 = vpop.f32.mrf.mxu0
        %v474 = vadd.f32 %v300, %v473
        %v475 = vpop.f32.mrf.mxu0
        %476 = vdwg.mxu0
        %477 = vmatpush.bf16.msra.mxu0 %v430
        %478 = vmatpush.bf16.msra.mxu0 %v428
        %479 = vmatpush.bf16.msra.mxu0 %v426
        %480 = vmatpush.bf16.msra.mxu0 %v424
        %481 = vmatpush.bf16.msra.mxu0 %v422
        %482 = vmatpush.bf16.msra.mxu0 %v420
        %483 = vmatpush.bf16.msra.mxu0 %v418
        %484 = vmatpush.bf16.msra.mxu0 %v416
        %485 = vmatmul.bf16.gmra.mxu0 %v265
        %v486 = vpop.f32.mrf.mxu0
        %v487 = vadd.f32 %v474, %v486
        %v488 = vpop.f32.mrf.mxu0
        %489 = vdwg.mxu0
        %490 = vmatpush.bf16.msra.mxu0 %v415
        %491 = vmatpush.bf16.msra.mxu0 %v413
        %492 = vmatpush.bf16.msra.mxu0 %v411
        %493 = vmatpush.bf16.msra.mxu0 %v409
        %494 = vmatpush.bf16.msra.mxu0 %v407
        %495 = vmatpush.bf16.msra.mxu0 %v405
        %496 = vmatpush.bf16.msra.mxu0 %v403
        %497 = vmatpush.bf16.msra.mxu0 %v401
        %498 = vmatmul.bf16.gmra.mxu0 %v264
        %v499 = vpop.f32.mrf.mxu0
        %v500 = vadd.f32 %v301, %v499
        %v501 = vpop.f32.mrf.mxu0
        %502 = vdwg.mxu0
        %503 = vmatpush.bf16.msra.mxu0 %v431
        %504 = vmatpush.bf16.msra.mxu0 %v429
        %505 = vmatpush.bf16.msra.mxu0 %v427
        %506 = vmatpush.bf16.msra.mxu0 %v425
        %507 = vmatpush.bf16.msra.mxu0 %v423
        %508 = vmatpush.bf16.msra.mxu0 %v421
        %509 = vmatpush.bf16.msra.mxu0 %v419
        %510 = vmatpush.bf16.msra.mxu0 %v417
        %511 = vmatmul.bf16.gmra.mxu0 %v265
        %v512 = vpop.f32.mrf.mxu0
        %v513 = vadd.f32 %v500, %v512
        %v514 = vpop.f32.mrf.mxu0
        %515 = vdwg.mxu0
        %v516 = vtanh.pop %v487
        %v517 = vmul.f32 %v513, 0.5
        %v518 = vtanh.pop %v517
        %v519 = vadd.f32 %v518, 1.0
        %v520 = vmul.f32 %v519, 0.5
        %v521 = vmul.f32 %v516, %v520
        %v522 = vld [vmem:[%s3] sm:$0x1]
        %v524 = vperm.slane %v522, 0
        %v526 = vmul.f32 %v521, %v524
        %527 = vadd.xlane.f32.xlu0 %v526
        %v528 = vpop.xlane.xlu0 %527
        %v529 = vld [vmem:[#allocation2] sm:$0x1]
        %v531 = vperm.slane %v529, 0
        %v533 = vadd.f32 %v528, %v531
        %vm534 = vcmask 7168
        %535 = vst.msk [vmem:[%s261] sm:$0xff] %vm534, %v533
        %p536 = scmp.lt.s32.totalorder %s22, 1
        %s537 = scalar_select %p536, %s22, 1
        %s538 = smul.addr %s537, 8
        %s539 = scalar_lea.vmem %s5, %s538
        // Predicated region
        $region49: #{tpu_custom_call.1} parent=39 // pred_check
          %p540 = pneg %p150
        $region50: #{tpu_custom_call.1} parent=39 // pred_check_branch
          %542 = sbr.rel (%p540) target = $region52
        $region51: #{tpu_custom_call.1} parent=39 // pred_region
          _
        $region52: #{tpu_custom_call.1} parent=39 // pred_fallthru
          _
      $region40: #{tpu_custom_call.1} parent=5 // pred_fallthru
        _
      %p543 = scmp.le.s32.totalorder 2, %s17
      // Predicated region
      $region53: #{tpu_custom_call.1} parent=5 // pred_check
        %p544 = pneg %p543
      $region54: #{tpu_custom_call.1} parent=5 // pred_check_branch
        %546 = sbr.rel (%p544) target = $region56
      $region55: #{tpu_custom_call.1} parent=5 // pred_region
        %s547 = ssub.s32 %s17, 2
        // Predicated region
        $region57: #{tpu_custom_call.1} parent=55 // pred_check
          %p548 = pneg %p156
        $region58: #{tpu_custom_call.1} parent=55 // pred_check_branch
          %550 = sbr.rel (%p548) target = $region60
        $region59: #{tpu_custom_call.1} parent=55 // pred_region
          %p551 = scmp.lt.s32.totalorder %s23, 1
          %s552 = scalar_select %p551, %s23, 1
          %s553 = smul.addr %s552, 8
          %s554 = scalar_lea.vmem %s5, %s553
        $region60: #{tpu_custom_call.1} parent=55 // pred_fallthru
          _
      $region56: #{tpu_custom_call.1} parent=5 // pred_fallthru
        _
    $region6: #{tpu_custom_call.1} parent=1 // loop_footer
      %s21 = sadd.s32 1, %s17
    $region7: #{tpu_custom_call.1} parent=1 // loop_footer_branch
      %16 = sbr.rel target = $region3
    $region8: #{tpu_custom_call.1} parent=1 // loop_exit
      _
    %555 = vsyncpa [#allocation4], 1
    %s556 = scalar_lea.sflag [#allocation4], 1
    %557 = vsyncpa %s556, 1
    %558 = vsyncpa [#allocation6], 1

// kernel: tpu_custom_call.1
$region0: #{tpu_custom_call.1}
  #allocation0 [shape = 'u32[]', space=smem, size = 0x4, offset = 0x4, fixed_abs, tag = 'smem constant byte address 0x4 - core index']
  #allocation1 [shape = 'u32[72,128]{1,0:T(1,128)}', space=vmem, size = 0x9000, scoped, tag = 'internal scratch']
  #allocation2 [shape = 'f32[1,1]{1,0:T(1,128)S(1)}', space=vmem, size = 0x200, scoped, tag = 'scoped memory for tpu_custom_call.1']
  %s0 = inlined_call_operand.hbm [shape: f32[16,256], index: 0, kind: input, shape index: {}]
  %s1 = inlined_call_operand.hbm [shape: bf16[256,256], index: 1, kind: input, shape index: {}]
  %s2 = inlined_call_operand.vmem [shape: f32[1,256], index: 2, kind: input, shape index: {}]
  %s3 = inlined_call_operand.vmem [shape: f32[1,128], index: 3, kind: input, shape index: {}]
  %s4 = inlined_call_operand.<no memory space> [shape: f32[1,1], index: 4, kind: input, shape index: {}]
  %s5 = inlined_call_operand.vmem [shape: f32[16,1], index: 5, kind: output, shape index: {}]
  %s6 = sld [smem:[#allocation0]]
  $region61: #{tpu_custom_call.1} parent=0
    _
  %s8 = ssub.s32 1, %s6
  %s9 = scalar_select 0, %s8, %s6
  %v10 = vstv %s4
  %11 = vst [vmem:[#allocation2] sm:$0x1] %v10
  $region1: #{tpu_custom_call.1} parent=0
    #allocation3 [shape = 'u8[16384]{0}', space=vmem, size = 0x4000, scoped, tag = 'input window, operand 0']
    #allocation4 [shape = 's32[2]{0}', space=sflag, size = 0x8, scoped, tag = 'scoped memory for tpu_custom_call.1']
    #allocation5 [shape = 'u8[131072]{0}', space=vmem, size = 0x20000, scoped, tag = 'input window, operand 1, single buffered']
    #allocation6 [shape = 's32[1]{0}', space=sflag, size = 0x4, scoped, tag = 'scoped memory for tpu_custom_call.1']
    %12 = vsyncpa [#allocation4], 0
    %s13 = scalar_lea.sflag [#allocation4], 1
    %14 = vsyncpa %s13, 0
    %15 = vsyncpa [#allocation6], 0
    loop: start=0, step=1, limit=4
    $region2: #{tpu_custom_call.1} parent=1 // loop_pre_header
      _
    $region3: #{tpu_custom_call.1} parent=1 // loop_header
      %s17 = sphi 0, %s21
      %p18 = scmp.ge.s32.totalorder %s17, 4
      %s27 = sphi 0, %s29
      %s30 = sphi 0, %s27
      %s31 = sphi 0, %s30
      %s47 = sphi 0, %s31
      %s51 = sphi 0, %s51
      %s53 = sphi 0, %s51
      %s54 = sphi 0, %s53
      %s68 = sphi 0, %s54
      %s72 = sphi 0, %s72
      %s74 = sphi 0, %s72
      %s75 = sphi 0, %s74
      %s89 = sphi 0, %s75
      %s93 = sphi 0, %s93
      %s95 = sphi 0, %s93
      %s96 = sphi 0, %s95
      %s110 = sphi 0, %s96
      %s114 = sphi 0, %s114
      %s116 = sphi 0, %s114
      %s117 = sphi 0, %s116
      %s131 = sphi 0, %s117
      %s137 = sphi 0, %s139
      %s140 = sphi 0, %s137
      %s141 = sphi 0, %s140
      %s157 = sphi 0, %s141
    $region4: #{tpu_custom_call.1} parent=1 // loop_header_branch
      %20 = sbr.rel (%p18) target = $region8
    $region5: #{tpu_custom_call.1} parent=1 // loop_body
      %s22 = ssub.s32 %s17, 1
      %s23 = ssub.s32 %s17, 2
      %s24 = sadd.s32 %s17, 1
      %s25 = ssub.s32 %s17, %s24
      %p26 = scmp.eq.s32.totalorder %s25, 0
      %s28 = sadd.s32 %s27, 1
      %s29 = scalar_select %p26, %s27, %s28
      %p32 = pneg %p26
      %p33 = scmp.eq.s32.totalorder %s17, 1
      %p34 = por %p32, %p33
      %p35 = scmp.ne.s32.totalorder %s27, %s30
      %p36 = scmp.eq.s32.totalorder %s17, 0
      %p37 = por %p35, %p36
      %p38 = scmp.ne.s32.totalorder %s27, %s30
      %p39 = scmp.eq.s32.totalorder %s22, 1
      %p40 = por %p38, %p39
      %p41 = scmp.ne.s32.totalorder %s30, %s31
      %p42 = scmp.eq.s32.totalorder %s22, 0
      %p43 = por %p41, %p42
      %p44 = scmp.ne.s32.totalorder %s30, %s31
      %p45 = scmp.eq.s32.totalorder %s23, 1
      %p46 = por %p44, %p45
      %p48 = scmp.ne.s32.totalorder %s31, %s47
      %p49 = scmp.eq.s32.totalorder %s23, 0
      %p50 = por %p48, %p49
      %s52 = sadd.s32 %s51, 1
      %p55 = scmp.eq.s32.totalorder %s17, 1
      %p56 = scmp.ne.s32.totalorder %s51, %s53
      %p57 = scmp.eq.s32.totalorder %s17, 0
      %p58 = por %p56, %p57
      %p59 = scmp.ne.s32.totalorder %s51, %s53
      %p60 = scmp.eq.s32.totalorder %s22, 1
      %p61 = por %p59, %p60
      %p62 = scmp.ne.s32.totalorder %s53, %s54
      %p63 = scmp.eq.s32.totalorder %s22, 0
      %p64 = por %p62, %p63
      %p65 = scmp.ne.s32.totalorder %s53, %s54
      %p66 = scmp.eq.s32.totalorder %s23, 1
      %p67 = por %p65, %p66
      %p69 = scmp.ne.s32.totalorder %s54, %s68
      %p70 = scmp.eq.s32.totalorder %s23, 0
      %p71 = por %p69, %p70
      %s73 = sadd.s32 %s72, 1
      %p76 = scmp.eq.s32.totalorder %s17, 1
      %p77 = scmp.ne.s32.totalorder %s72, %s74
      %p78 = scmp.eq.s32.totalorder %s17, 0
      %p79 = por %p77, %p78
      %p80 = scmp.ne.s32.totalorder %s72, %s74
      %p81 = scmp.eq.s32.totalorder %s22, 1
      %p82 = por %p80, %p81
      %p83 = scmp.ne.s32.totalorder %s74, %s75
      %p84 = scmp.eq.s32.totalorder %s22, 0
      %p85 = por %p83, %p84
      %p86 = scmp.ne.s32.totalorder %s74, %s75
      %p87 = scmp.eq.s32.totalorder %s23, 1
      %p88 = por %p86, %p87
      %p90 = scmp.ne.s32.totalorder %s75, %s89
      %p91 = scmp.eq.s32.totalorder %s23, 0
      %p92 = por %p90, %p91
      %s94 = sadd.s32 %s93, 1
      %p97 = scmp.eq.s32.totalorder %s17, 1
      %p98 = scmp.ne.s32.totalorder %s93, %s95
      %p99 = scmp.eq.s32.totalorder %s17, 0
      %p100 = por %p98, %p99
      %p101 = scmp.ne.s32.totalorder %s93, %s95
      %p102 = scmp.eq.s32.totalorder %s22, 1
      %p103 = por %p101, %p102
      %p104 = scmp.ne.s32.totalorder %s95, %s96
      %p105 = scmp.eq.s32.totalorder %s22, 0
      %p106 = por %p104, %p105
      %p107 = scmp.ne.s32.totalorder %s95, %s96
      %p108 = scmp.eq.s32.totalorder %s23, 1
      %p109 = por %p107, %p108
      %p111 = scmp.ne.s32.totalorder %s96, %s110
      %p112 = scmp.eq.s32.totalorder %s23, 0
      %p113 = por %p111, %p112
      %s115 = sadd.s32 %s114, 1
      %p118 = scmp.eq.s32.totalorder %s17, 1
      %p119 = scmp.ne.s32.totalorder %s114, %s116
      %p120 = scmp.eq.s32.totalorder %s17, 0
      %p121 = por %p119, %p120
      %p122 = scmp.ne.s32.totalorder %s114, %s116
      %p123 = scmp.eq.s32.totalorder %s22, 1
      %p124 = por %p122, %p123
      %p125 = scmp.ne.s32.totalorder %s116, %s117
      %p126 = scmp.eq.s32.totalorder %s22, 0
      %p127 = por %p125, %p126
      %p128 = scmp.ne.s32.totalorder %s116, %s117
      %p129 = scmp.eq.s32.totalorder %s23, 1
      %p130 = por %p128, %p129
      %p132 = scmp.ne.s32.totalorder %s117, %s131
      %p133 = scmp.eq.s32.totalorder %s23, 0
      %p134 = por %p132, %p133
      %s135 = ssub.s32 %s17, %s24
      %p136 = scmp.eq.s32.totalorder %s135, 0
      %s138 = sadd.s32 %s137, 1
      %s139 = scalar_select %p136, %s137, %s138
      %p142 = pneg %p136
      %p143 = scmp.eq.s32.totalorder %s17, 1
      %p144 = por %p142, %p143
      %p145 = scmp.ne.s32.totalorder %s137, %s140
      %p146 = scmp.eq.s32.totalorder %s17, 0
      %p147 = por %p145, %p146
      %p148 = scmp.ne.s32.totalorder %s137, %s140
      %p149 = scmp.eq.s32.totalorder %s22, 1
      %p150 = por %p148, %p149
      %p151 = scmp.ne.s32.totalorder %s140, %s141
      %p152 = scmp.eq.s32.totalorder %s22, 0
      %p153 = por %p151, %p152
      %p154 = scmp.ne.s32.totalorder %s140, %s141
      %p155 = scmp.eq.s32.totalorder %s23, 1
      %p156 = por %p154, %p155
      %p158 = scmp.ne.s32.totalorder %s141, %s157
      %p159 = scmp.eq.s32.totalorder %s23, 0
      %p160 = por %p158, %p159
      %p161 = scmp.le.s32.totalorder 1, %s17
      %p162 = scmp.lt.s32.totalorder %s17, 3
      %p163 = pnand %p161, %p162
      %p164 = pneg %p163
      // Predicated region
      $region9: #{tpu_custom_call.1} parent=5 // pred_check
        _
      $region10: #{tpu_custom_call.1} parent=5 // pred_check_branch
        %166 = sbr.rel (%p163) target = $region12
      $region11: #{tpu_custom_call.1} parent=5 // pred_region
        %s167 = ssub.s32 %s17, 1
        // Predicated region
        $region13: #{tpu_custom_call.1} parent=11 // pred_check
          %p168 = pneg %p64
        $region14: #{tpu_custom_call.1} parent=11 // pred_check_branch
          %170 = sbr.rel (%p168) target = $region16
        $region15: #{tpu_custom_call.1} parent=11 // pred_region
          %172 = vsyncadd [#allocation6], 0
          %s173 = sshll.u32 %s1, 4
          %s174 = int_to_ptr.hbm [resolvable:$true] %s173
          %s175 = sshll.u32 [#allocation5], 4
          %s176 = int_to_ptr.vmem [resolvable:$true] %s175
          %181 = dma.hbm_to_vmem [thread:$0]  %s174, 4096, %s176, [#allocation6], 128, 128, 8
        $region16: #{tpu_custom_call.1} parent=11 // pred_fallthru
          _
        // Predicated region
        $region17: #{tpu_custom_call.1} parent=11 // pred_check
          %p182 = pneg %p85
        $region18: #{tpu_custom_call.1} parent=11 // pred_check_branch
          %184 = sbr.rel (%p182) target = $region20
        $region19: #{tpu_custom_call.1} parent=11 // pred_region
          _
        $region20: #{tpu_custom_call.1} parent=11 // pred_fallthru
          _
        // Predicated region
        $region21: #{tpu_custom_call.1} parent=11 // pred_check
          %p185 = pneg %p106
        $region22: #{tpu_custom_call.1} parent=11 // pred_check_branch
          %187 = sbr.rel (%p185) target = $region24
        $region23: #{tpu_custom_call.1} parent=11 // pred_region
          _
        $region24: #{tpu_custom_call.1} parent=11 // pred_fallthru
          _
        // Predicated region
        $region25: #{tpu_custom_call.1} parent=11 // pred_check
          %p188 = pneg %p127
        $region26: #{tpu_custom_call.1} parent=11 // pred_check_branch
          %190 = sbr.rel (%p188) target = $region28
        $region27: #{tpu_custom_call.1} parent=11 // pred_region
          _
        $region28: #{tpu_custom_call.1} parent=11 // pred_fallthru
          _
      $region12: #{tpu_custom_call.1} parent=5 // pred_fallthru
        _
      %p191 = scmp.lt.s32.totalorder %s17, 2
      // Predicated region
      $region29: #{tpu_custom_call.1} parent=5 // pred_check
        %p192 = pneg %p191
      $region30: #{tpu_custom_call.1} parent=5 // pred_check_branch
        %194 = sbr.rel (%p192) target = $region32
      $region31: #{tpu_custom_call.1} parent=5 // pred_region
        // Predicated region
        $region33: #{tpu_custom_call.1} parent=31 // pred_check
          %p195 = pneg %p37
        $region34: #{tpu_custom_call.1} parent=31 // pred_check_branch
          %197 = sbr.rel (%p195) target = $region36
        $region35: #{tpu_custom_call.1} parent=31 // pred_region
          %s198 = sand.u32 %s27, 1
          %s199 = scalar_lea.sflag [#allocation4], %s198
          %s200 = sand.u32 %s27, 1
          %s201 = smul.addr %s200, 16
          %s202 = scalar_lea.vmem [#allocation3], %s201
          %204 = vsyncadd %s199, 0
          %s205 = smul.addr %s17, 2
          %s206 = smul.addr %s205, 8
          %s207 = scalar_lea.hbm %s0, %s206
          %s209 = sshll.u32 %s207, 4
          %s210 = int_to_ptr.hbm [resolvable:$true] %s209
          %s211 = sshll.u32 %s202, 4
          %s212 = int_to_ptr.vmem [resolvable:$true] %s211
          %214 = dma.hbm_to_vmem [thread:$0]  %s210, 256, %s212, %s199
        $region36: #{tpu_custom_call.1} parent=31 // pred_fallthru
          _
      $region32: #{tpu_custom_call.1} parent=5 // pred_fallthru
        _
      %p215 = scmp.le.s32.totalorder 1, %s17
      %p216 = scmp.lt.s32.totalorder %s17, 3
      %p217 = pnand %p215, %p216
      %p218 = pneg %p217
      // Predicated region
      $region37: #{tpu_custom_call.1} parent=5 // pred_check
        _
      $region38: #{tpu_custom_call.1} parent=5 // pred_check_branch
        %220 = sbr.rel (%p217) target = $region40
      $region39: #{tpu_custom_call.1} parent=5 // pred_region
        %s221 = ssub.s32 %s17, 1
        %s222 = sand.u32 %s30, 1
        %s223 = scalar_lea.sflag [#allocation4], %s222
        %s224 = sand.u32 %s30, 1
        %s225 = smul.addr %s224, 16
        %s226 = scalar_lea.vmem [#allocation3], %s225
        // Predicated region
        $region41: #{tpu_custom_call.1} parent=39 // pred_check
          %p227 = pneg %p43
        $region42: #{tpu_custom_call.1} parent=39 // pred_check_branch
          %229 = sbr.rel (%p227) target = $region44
        $region43: #{tpu_custom_call.1} parent=39 // pred_region
          %231 = dma.done %s223, 256
        $region44: #{tpu_custom_call.1} parent=39 // pred_fallthru
          _
        // Predicated region
        $region45: #{tpu_custom_call.1} parent=39 // pred_check
          %p232 = pneg %p64
        $region46: #{tpu_custom_call.1} parent=39 // pred_check_branch
          %234 = sbr.rel (%p232) target = $region48
        $region47: #{tpu_custom_call.1} parent=39 // pred_region
          %236 = dma.done [#allocation6], 4096
        $region48: #{tpu_custom_call.1} parent=39 // pred_fallthru
          _
        %s237 = sand.u32 %s30, 1
        %s238 = scalar_lea.sflag [#allocation4], %s237
        %s239 = sand.u32 %s30, 1
        %s240 = smul.addr %s239, 16
        %s241 = scalar_lea.vmem [#allocation3], %s240
        %p242 = pneg %p43
        %p243 = pneg %p40
        %p244 = pneg %p64
        %p245 = pneg %p61
        %p246 = pneg %p85
        %p247 = pneg %p82
        %p248 = pneg %p106
        %p249 = pneg %p103
        %p250 = pneg %p127
        %p251 = pneg %p124
        %p252 = pneg %p153
        %p253 = pneg %p150
        %p254 = scmp.lt.s32.totalorder %s22, 1
        %s255 = scalar_select %p254, %s22, 1
        %s256 = smul.addr %s255, 8
        %s257 = scalar_lea.vmem %s5, %s256
        %p258 = scmp.lt.s32.totalorder %s22, 1
        %s259 = scalar_select %p258, %s22, 1
        %s260 = smul.addr %s259, 8
        %s261 = scalar_lea.vmem %s5, %s260
        %v262 = vld [vmem:[%s226] sm:$0xff]
        %v263 = vld [vmem:[%s226 + $0x8] sm:$0xff]
        %v264 = vpack.c.bf16 %v262, %v262
        %v265 = vpack.c.bf16 %v263, %v263
        %v266 = vld [vmem:[#allocation5] sm:$0xff]
        %v267 = vld [vmem:[#allocation5 + $0x8] sm:$0xff]
        %v268 = vld [vmem:[#allocation5 + $0x10] sm:$0xff]
        %v269 = vld [vmem:[#allocation5 + $0x18] sm:$0xff]
        %v270 = vld [vmem:[#allocation5 + $0x20] sm:$0xff]
        %v271 = vld [vmem:[#allocation5 + $0x28] sm:$0xff]
        %v272 = vld [vmem:[#allocation5 + $0x30] sm:$0xff]
        %v273 = vld [vmem:[#allocation5 + $0x38] sm:$0xff]
        %v274 = vld [vmem:[#allocation5 + $0x40] sm:$0xff]
        %v275 = vld [vmem:[#allocation5 + $0x48] sm:$0xff]
        %v276 = vld [vmem:[#allocation5 + $0x50] sm:$0xff]
        %v277 = vld [vmem:[#allocation5 + $0x58] sm:$0xff]
        %v278 = vld [vmem:[#allocation5 + $0x60] sm:$0xff]
        %v279 = vld [vmem:[#allocation5 + $0x68] sm:$0xff]
        %v280 = vld [vmem:[#allocation5 + $0x70] sm:$0xff]
        %v281 = vld [vmem:[#allocation5 + $0x78] sm:$0xff]
        %v282 = vld [vmem:[#allocation5 + $0x80] sm:$0xff]
        %v283 = vld [vmem:[#allocation5 + $0x88] sm:$0xff]
        %v284 = vld [vmem:[#allocation5 + $0x90] sm:$0xff]
        %v285 = vld [vmem:[#allocation5 + $0x98] sm:$0xff]
        %v286 = vld [vmem:[#allocation5 + $0xa0] sm:$0xff]
        %v287 = vld [vmem:[#allocation5 + $0xa8] sm:$0xff]
        %v288 = vld [vmem:[#allocation5 + $0xb0] sm:$0xff]
        %v289 = vld [vmem:[#allocation5 + $0xb8] sm:$0xff]
        %v290 = vld [vmem:[#allocation5 + $0xc0] sm:$0xff]
        %v291 = vld [vmem:[#allocation5 + $0xc8] sm:$0xff]
        %v292 = vld [vmem:[#allocation5 + $0xd0] sm:$0xff]
        %v293 = vld [vmem:[#allocation5 + $0xd8] sm:$0xff]
        %v294 = vld [vmem:[#allocation5 + $0xe0] sm:$0xff]
        %v295 = vld [vmem:[#allocation5 + $0xe8] sm:$0xff]
        %v296 = vld [vmem:[#allocation5 + $0xf0] sm:$0xff]
        %v297 = vld [vmem:[#allocation5 + $0xf8] sm:$0xff]
        %v298 = vld [vmem:[%s2] sm:$0x3]
        %v300 = vperm.slane %v298, 0
        %v301 = vperm.slane %v298, 1
        %v336 = vunpack.c.l.b16 %v266
        %v337 = vunpack.c.h.b16 %v266
        %v338 = vunpack.c.l.b16 %v267
        %v339 = vunpack.c.h.b16 %v267
        %v340 = vunpack.c.l.b16 %v268
        %v341 = vunpack.c.h.b16 %v268
        %v342 = vunpack.c.l.b16 %v269
        %v343 = vunpack.c.h.b16 %v269
        %v344 = vunpack.c.l.b16 %v270
        %v345 = vunpack.c.h.b16 %v270
        %v346 = vunpack.c.l.b16 %v271
        %v347 = vunpack.c.h.b16 %v271
        %v348 = vunpack.c.l.b16 %v272
        %v349 = vunpack.c.h.b16 %v272
        %v350 = vunpack.c.l.b16 %v273
        %v351 = vunpack.c.h.b16 %v273
        %v352 = vunpack.c.l.b16 %v274
        %v353 = vunpack.c.h.b16 %v274
        %v354 = vunpack.c.l.b16 %v275
        %v355 = vunpack.c.h.b16 %v275
        %v356 = vunpack.c.l.b16 %v276
        %v357 = vunpack.c.h.b16 %v276
        %v358 = vunpack.c.l.b16 %v277
        %v359 = vunpack.c.h.b16 %v277
        %v360 = vunpack.c.l.b16 %v278
        %v361 = vunpack.c.h.b16 %v278
        %v362 = vunpack.c.l.b16 %v279
        %v363 = vunpack.c.h.b16 %v279
        %v364 = vunpack.c.l.b16 %v280
        %v365 = vunpack.c.h.b16 %v280
        %v366 = vunpack.c.l.b16 %v281
        %v367 = vunpack.c.h.b16 %v281
        %v368 = vunpack.c.l.b16 %v282
        %v369 = vunpack.c.h.b16 %v282
        %v370 = vunpack.c.l.b16 %v283
        %v371 = vunpack.c.h.b16 %v283
        %v372 = vunpack.c.l.b16 %v284
        %v373 = vunpack.c.h.b16 %v284
        %v374 = vunpack.c.l.b16 %v285
        %v375 = vunpack.c.h.b16 %v285
        %v376 = vunpack.c.l.b16 %v286
        %v377 = vunpack.c.h.b16 %v286
        %v378 = vunpack.c.l.b16 %v287
        %v379 = vunpack.c.h.b16 %v287
        %v380 = vunpack.c.l.b16 %v288
        %v381 = vunpack.c.h.b16 %v288
        %v382 = vunpack.c.l.b16 %v289
        %v383 = vunpack.c.h.b16 %v289
        %v384 = vunpack.c.l.b16 %v290
        %v385 = vunpack.c.h.b16 %v290
        %v386 = vunpack.c.l.b16 %v291
        %v387 = vunpack.c.h.b16 %v291
        %v388 = vunpack.c.l.b16 %v292
        %v389 = vunpack.c.h.b16 %v292
        %v390 = vunpack.c.l.b16 %v293
        %v391 = vunpack.c.h.b16 %v293
        %v392 = vunpack.c.l.b16 %v294
        %v393 = vunpack.c.h.b16 %v294
        %v394 = vunpack.c.l.b16 %v295
        %v395 = vunpack.c.h.b16 %v295
        %v396 = vunpack.c.l.b16 %v296
        %v397 = vunpack.c.h.b16 %v296
        %v398 = vunpack.c.l.b16 %v297
        %v399 = vunpack.c.h.b16 %v297
        %v400 = vpack.c.b16 %v338, %v336
        %v401 = vpack.c.b16 %v339, %v337
        %v402 = vpack.c.b16 %v342, %v340
        %v403 = vpack.c.b16 %v343, %v341
        %v404 = vpack.c.b16 %v346, %v344
        %v405 = vpack.c.b16 %v347, %v345
        %v406 = vpack.c.b16 %v350, %v348
        %v407 = vpack.c.b16 %v351, %v349
        %v408 = vpack.c.b16 %v354, %v352
        %v409 = vpack.c.b16 %v355, %v353
        %v410 = vpack.c.b16 %v358, %v356
        %v411 = vpack.c.b16 %v359, %v357
        %v412 = vpack.c.b16 %v362, %v360
        %v413 = vpack.c.b16 %v363, %v361
        %v414 = vpack.c.b16 %v366, %v364
        %v415 = vpack.c.b16 %v367, %v365
        %v416 = vpack.c.b16 %v370, %v368
        %v417 = vpack.c.b16 %v371, %v369
        %v418 = vpack.c.b16 %v374, %v372
        %v419 = vpack.c.b16 %v375, %v373
        %v420 = vpack.c.b16 %v378, %v376
        %v421 = vpack.c.b16 %v379, %v377
        %v422 = vpack.c.b16 %v382, %v380
        %v423 = vpack.c.b16 %v383, %v381
        %v424 = vpack.c.b16 %v386, %v384
        %v425 = vpack.c.b16 %v387, %v385
        %v426 = vpack.c.b16 %v390, %v388
        %v427 = vpack.c.b16 %v391, %v389
        %v428 = vpack.c.b16 %v394, %v392
        %v429 = vpack.c.b16 %v395, %v393
        %v430 = vpack.c.b16 %v398, %v396
        %v431 = vpack.c.b16 %v399, %v397
        %464 = vmatpush.bf16.msra.mxu0 %v414
        %465 = vmatpush.bf16.msra.mxu0 %v412
        %466 = vmatpush.bf16.msra.mxu0 %v410
        %467 = vmatpush.bf16.msra.mxu0 %v408
        %468 = vmatpush.bf16.msra.mxu0 %v406
        %469 = vmatpush.bf16.msra.mxu0 %v404
        %470 = vmatpush.bf16.msra.mxu0 %v402
        %471 = vmatpush.bf16.msra.mxu0 %v400
        %472 = vmatmul.bf16.gmra.mxu0 %v264
        %v473 = vpop.f32.mrf.mxu0
        %v474 = vadd.f32 %v300, %v473
        %v475 = vpop.f32.mrf.mxu0
        %476 = vdwg.mxu0
        %477 = vmatpush.bf16.msra.mxu0 %v430
        %478 = vmatpush.bf16.msra.mxu0 %v428
        %479 = vmatpush.bf16.msra.mxu0 %v426
        %480 = vmatpush.bf16.msra.mxu0 %v424
        %481 = vmatpush.bf16.msra.mxu0 %v422
        %482 = vmatpush.bf16.msra.mxu0 %v420
        %483 = vmatpush.bf16.msra.mxu0 %v418
        %484 = vmatpush.bf16.msra.mxu0 %v416
        %485 = vmatmul.bf16.gmra.mxu0 %v265
        %v486 = vpop.f32.mrf.mxu0
        %v487 = vadd.f32 %v474, %v486
        %v488 = vpop.f32.mrf.mxu0
        %489 = vdwg.mxu0
        %490 = vmatpush.bf16.msra.mxu0 %v415
        %491 = vmatpush.bf16.msra.mxu0 %v413
        %492 = vmatpush.bf16.msra.mxu0 %v411
        %493 = vmatpush.bf16.msra.mxu0 %v409
        %494 = vmatpush.bf16.msra.mxu0 %v407
        %495 = vmatpush.bf16.msra.mxu0 %v405
        %496 = vmatpush.bf16.msra.mxu0 %v403
        %497 = vmatpush.bf16.msra.mxu0 %v401
        %498 = vmatmul.bf16.gmra.mxu0 %v264
        %v499 = vpop.f32.mrf.mxu0
        %v500 = vadd.f32 %v301, %v499
        %v501 = vpop.f32.mrf.mxu0
        %502 = vdwg.mxu0
        %503 = vmatpush.bf16.msra.mxu0 %v431
        %504 = vmatpush.bf16.msra.mxu0 %v429
        %505 = vmatpush.bf16.msra.mxu0 %v427
        %506 = vmatpush.bf16.msra.mxu0 %v425
        %507 = vmatpush.bf16.msra.mxu0 %v423
        %508 = vmatpush.bf16.msra.mxu0 %v421
        %509 = vmatpush.bf16.msra.mxu0 %v419
        %510 = vmatpush.bf16.msra.mxu0 %v417
        %511 = vmatmul.bf16.gmra.mxu0 %v265
        %v512 = vpop.f32.mrf.mxu0
        %v513 = vadd.f32 %v500, %v512
        %v514 = vpop.f32.mrf.mxu0
        %515 = vdwg.mxu0
        %v516 = vtanh.pop %v487
        %v517 = vmul.f32 %v513, 0.5
        %v518 = vtanh.pop %v517
        %v519 = vadd.f32 %v518, 1.0
        %v520 = vmul.f32 %v519, 0.5
        %v521 = vmul.f32 %v516, %v520
        %v522 = vld [vmem:[%s3] sm:$0x1]
        %v524 = vperm.slane %v522, 0
        %v526 = vmul.f32 %v521, %v524
        %527 = vadd.xlane.f32.xlu0 %v526
        %v528 = vpop.xlane.xlu0 %527
        %v529 = vld [vmem:[#allocation2] sm:$0x1]
        %v531 = vperm.slane %v529, 0
        %v533 = vadd.f32 %v528, %v531
        %vm534 = vcmask 7168
        %535 = vst.msk [vmem:[%s261] sm:$0xff] %vm534, %v533
        %p536 = scmp.lt.s32.totalorder %s22, 1
        %s537 = scalar_select %p536, %s22, 1
        %s538 = smul.addr %s537, 8
        %s539 = scalar_lea.vmem %s5, %s538
        // Predicated region
        $region49: #{tpu_custom_call.1} parent=39 // pred_check
          %p540 = pneg %p150
        $region50: #{tpu_custom_call.1} parent=39 // pred_check_branch
          %542 = sbr.rel (%p540) target = $region52
        $region51: #{tpu_custom_call.1} parent=39 // pred_region
          _
        $region52: #{tpu_custom_call.1} parent=39 // pred_fallthru
          _
      $region40: #{tpu_custom_call.1} parent=5 // pred_fallthru
        _
      %p543 = scmp.le.s32.totalorder 2, %s17
      // Predicated region
      $region53: #{tpu_custom_call.1} parent=5 // pred_check
        %p544 = pneg %p543
      $region54: #{tpu_custom_call.1} parent=5 // pred_check_branch
        %546 = sbr.rel (%p544) target = $region56
      $region55: #{tpu_custom_call.1} parent=5 // pred_region
        %s547 = ssub.s32 %s17, 2
        // Predicated region
        $region57: #{tpu_custom_call.1} parent=55 // pred_check
          %p548 = pneg %p156
        $region58: #{tpu_custom_call.1} parent=55 // pred_check_branch
          %550 = sbr.rel (%p548) target = $region60
        $region59: #{tpu_custom_call.1} parent=55 // pred_region
          %p551 = scmp.lt.s32.totalorder %s23, 1
          %s552 = scalar_select %p551, %s23, 1
          %s553 = smul.addr %s552, 8
          %s554 = scalar_lea.vmem %s5, %s553
        $region60: #{tpu_custom_call.1} parent=55 // pred_fallthru
          _
      $region56: #{tpu_custom_call.1} parent=5 // pred_fallthru
        _
    $region6: #{tpu_custom_call.1} parent=1 // loop_footer
      %s21 = sadd.s32 1, %s17
    $region7: #{tpu_custom_call.1} parent=1 // loop_footer_branch
      %16 = sbr.rel target = $region3
    $region8: #{tpu_custom_call.1} parent=1 // loop_exit
      _
    %555 = vsyncpa [#allocation4], 1
    %s556 = scalar_lea.sflag [#allocation4], 1
    %557 = vsyncpa %s556, 1
    %558 = vsyncpa [#allocation6], 1

</llo_original>
